<compile_context>
chip_gen: v5e
topology: v5e:2x2
jax: 0.10.0
libtpu: 0.0.40
codegen_flags: <defaults>
</compile_context>

<pallas_src>
import functools

import jax
import jax.numpy as jnp
from jax.experimental import pallas as pl
from jax.experimental.pallas import tpu as pltpu


def _round_up(v, m):
    return ((v + m - 1) // m) * m


def _pick_tile(dim, align, cap):
    """Choose (padded_dim, tile) so tile is a multiple of `align`, <= ~cap, and
    divides padded_dim; padding overhead is at most one `align` chunk per tile
    (never a full-tile round-up)."""
    base = _round_up(dim, align)
    units = base // align
    cap_units = max(1, cap // align)
    ntiles = -(-units // cap_units)          # cdiv
    tile_units = -(-units // ntiles)         # cdiv
    tile = tile_units * align
    return tile * ntiles, tile


def _generator_masked_kernel(x_ref, wt_ref, b_ref, m_ref, o_ref):
    k = pl.program_id(2)

    @pl.when(k == 0)
    def _init():
        o_ref[...] = jnp.zeros_like(o_ref)

    # MXU matmul with f32 accumulation directly into the VMEM-resident output
    # tile (out BlockSpec is k-invariant, so no separate scratch accumulator).
    o_ref[...] += jnp.dot(x_ref[...], wt_ref[...],
                          preferred_element_type=jnp.float32)

    @pl.when(k == pl.num_programs(2) - 1)
    def _finalize():
        y = o_ref[...] + b_ref[...]
        # Predicated select instead of mask.astype(f32) * y: skips the int8->f32
        # convert on the VPU; zeros in padded N columns are harmless (sliced off).
        o_ref[...] = jnp.where(m_ref[...] != 0, y, 0.0)


def prepare_params(weight, bias, *, tn=1024, tk=1024, use_bf16=False):
    """One-time parameter prep (hoisted out of the per-call path).

    nn.Linear weight (C, D) -> transposed, zero-padded W.T of shape (Kp, Np);
    bias -> zero-padded (1, Np).  Tile sizes along N/K are fixed here because
    they only depend on C/D, so the padded weight never has to be touched again.
    """
    C, D = weight.shape
    wt = weight.T                                        # (D, C)
    Kp, tk = _pick_tile(D, 128, tk)
    Np, tn = _pick_tile(C, 128, tn)
    op_dtype = jnp.bfloat16 if use_bf16 else jnp.float32
    wtp = jnp.pad(wt, ((0, Kp - D), (0, Np - C))).astype(op_dtype)
    bp = jnp.pad(bias.reshape(1, -1).astype(jnp.float32), ((0, 0), (0, Np - C)))
    return {"wt": wtp, "bias": bp, "C": C, "tn": tn, "tk": tk,
            "use_bf16": use_bf16}


@functools.partial(jax.jit,
                   static_argnames=("C", "tn", "tk", "tm", "use_bf16",
                                    "force_pallas"))
def _generator_masked_impl(x, mask, wtp, bp, *, C, tn, tk, tm, use_bf16,
                           force_pallas):
    B, D = x.shape
    Kp, Np = wtp.shape

    # Tiny-problem bypass: padding + (8,128) minimum tiles + launch overhead
    # dominate below ~one tile of work; XLA's fused dot wins there.
    if not force_pallas and (B * C * D) < (128 * 128 * 128):
        y = jnp.dot(x.astype(jnp.float32), wtp[:D, :C].astype(jnp.float32),
                    preferred_element_type=jnp.float32) + bp[0, :C]
        return jnp.where(mask != 0, y, 0.0)

    Mp, tm = _pick_tile(B, 8, tm)

    op_dtype = jnp.bfloat16 if use_bf16 else jnp.float32
    xp = jnp.pad(x, ((0, Mp - B), (0, Kp - D))).astype(op_dtype)
    mp = jnp.pad(mask.astype(jnp.int8), ((0, Mp - B), (0, Np - C)))

    grid_i, grid_j, grid_k = Mp // tm, Np // tn, Kp // tk

    # Megacore (v7x, 2 TCs): guarantee >= 2 parallel (i, j) tiles when the
    # output dimension allows it.  No-op on single-TC v5e/v6e.
    if grid_i * grid_j == 1 and Np % 256 == 0:
        tn = Np // 2                         # still a multiple of 128, divides Np
        grid_j = Np // tn

    # Double-buffered working set; clamp so it also fits v7x's 64 MiB VMEM.
    op_bytes = 2 if use_bf16 else 4
    working_set = 2 * (tm * tk * op_bytes      # x tiles
                       + tk * tn * op_bytes    # W.T tiles
                       + tn * 4                # bias tiles
                       + tm * tn * 1           # int8 mask tiles
                       + tm * tn * 4)          # f32 output tiles
    vmem_limit = int(min(max(working_set * 3 // 2, 32 * 1024 * 1024),
                         56 * 1024 * 1024))

    out = pl.pallas_call(
        _generator_masked_kernel,
        out_shape=jax.ShapeDtypeStruct((Mp, Np), jnp.float32),
        grid_spec=pltpu.PrefetchScalarGridSpec(
            num_scalar_prefetch=0,
            grid=(grid_i, grid_j, grid_k),
            in_specs=[
                pl.BlockSpec((tm, tk), lambda i, j, k: (i, k)),   # x tile
                pl.BlockSpec((tk, tn), lambda i, j, k: (k, j)),   # W.T tile
                pl.BlockSpec((1, tn), lambda i, j, k: (0, j)),    # bias tile
                pl.BlockSpec((tm, tn), lambda i, j, k: (i, j)),   # mask tile
            ],
            out_specs=pl.BlockSpec((tm, tn), lambda i, j, k: (i, j)),
        ),
        compiler_params=pltpu.CompilerParams(
            dimension_semantics=("parallel", "parallel", "arbitrary"),
            vmem_limit_bytes=vmem_limit,
        ),
    )(xp, wtp, bp, mp)

    return out[:B, :C]


def generator_masked(x, mask, params, *, tm=512, force_pallas=False):
    """x: (B, D) f32; mask: (B, C) int8/bool; params: from prepare_params()."""
    return _generator_masked_impl(
        x, mask, params["wt"], params["bias"],
        C=params["C"], tn=params["tn"], tk=params["tk"], tm=tm,
        use_bf16=params["use_bf16"], force_pallas=force_pallas)


if __name__ == "__main__":
    batchsize, classnum, seqlen, dim1 = 3, 6, 5, 6

    # Deterministic parameters taken directly from the module's __init__.
    weight = jnp.array(
        [[0.149, -0.0909, 0.0056, 0.2489, 0.2706, 0.3366],
         [0.2262, 0.3199, -0.1338, 0.1753, -0.3995, -0.2002],
         [0.3979, 0.0298, 0.3689, -0.232, -0.0523, -0.0655],
         [-0.347, -0.2024, 0.0705, 0.1303, -0.0123, -0.224],
         [-0.032, -0.0361, 0.0675, 0.3214, 0.343, -0.3797],
         [0.2855, -0.2217, 0.1066, 0.0015, -0.1856, -0.1491]],
        dtype=jnp.float32)
    bias = jnp.array([0.317, 0.2004, -0.3995, -0.2146, 0.2227, 0.3299],
                     dtype=jnp.float32)

    # Input from the reference script.
    x = jnp.array(
        [[0.1334, 0.4332, 0.9542, 0.0585, 0.7362, 0.9372],
         [0.1247, 0.2, 0.6954, 0.4101, 0.0087, 0.5814],
         [0.5126, 0.5473, 0.4716, 0.952, 0.73, 0.0541]],
        dtype=jnp.float32)

    key = jax.random.PRNGKey(0)
    k_mask, k_x2, k_w2, k_b2, k_m2 = jax.random.split(key, 5)

    # Deterministic 0/1 mask in a narrow dtype (cast handled inside the kernel).
    mask = jax.random.bernoulli(k_mask, p=0.5,
                                shape=(batchsize, classnum)).astype(jnp.int8)

    # One-time parameter preparation (transpose + padding hoisted out of forward).
    params = prepare_params(weight, bias)

    # Module-sized check: force the Pallas path so the kernel itself runs.
    out = generator_masked(x, mask, params, force_pallas=True)
    out = jax.block_until_ready(out)
    ref = (x @ weight.T + bias) * mask.astype(jnp.float32)
    assert jnp.allclose(out, ref, atol=1e-5), (out, ref)

    # Larger multi-tile check (exercises the K-reduction grid and N/M tiling).
    B2, D2, C2 = 64, 256, 384
    x2 = jax.random.normal(k_x2, (B2, D2), dtype=jnp.float32)
    w2 = jax.random.normal(k_w2, (C2, D2), dtype=jnp.float32) * 0.05
    b2 = jax.random.normal(k_b2, (C2,), dtype=jnp.float32)
    m2 = jax.random.bernoulli(k_m2, p=0.5, shape=(B2, C2)).astype(jnp.int8)
    params2 = prepare_params(w2, b2, tn=128, tk=128)   # small caps -> grid (1,3,2)
    out2 = jax.block_until_ready(generator_masked(x2, m2, params2, tm=64))
    ref2 = (x2 @ w2.T + b2) * m2.astype(jnp.float32)
    assert jnp.allclose(out2, ref2, atol=1e-4), (out2, ref2)

    print("KERNEL_OK")
</pallas_src>

<mosaic_0001>
module attributes {stable_mosaic.version = 11 : i64} {
  func.func @_generator_masked_kernel(%arg0: i32, %arg1: i32, %arg2: i32, %arg3: memref<8x128xf32, #tpu.memory_space<vmem>>, %arg4: memref<128x128xf32, #tpu.memory_space<vmem>>, %arg5: memref<1x128xf32, #tpu.memory_space<vmem>>, %arg6: memref<8x128xi8, #tpu.memory_space<vmem>>, %arg7: memref<8x128xf32, #tpu.memory_space<vmem>>) attributes {dimension_semantics = [#tpu.dimension_semantics<parallel>, #tpu.dimension_semantics<parallel>, #tpu.dimension_semantics<arbitrary>], iteration_bounds = array<i64: 1, 1, 1>, scalar_prefetch = 0 : i64, scratch_operands = 0 : i64, tpu.core_type = #tpu.core_type<tc>, window_params = [{transform_indices = @transform_0, window_bounds = array<i64: 8, 128>}, {transform_indices = @transform_1, window_bounds = array<i64: 128, 128>}, {transform_indices = @transform_2, window_bounds = array<i64: 1, 128>}, {transform_indices = @transform_3, window_bounds = array<i64: 8, 128>}, {transform_indices = @transform_4, window_bounds = array<i64: 8, 128>}]} {
    %c0_i32 = arith.constant 0 : i32
    %0 = arith.cmpi eq, %arg2, %c0_i32 : i32
    %1 = arith.extui %0 : i1 to i32
    %c0_i32_0 = arith.constant 0 : i32
    %2 = arith.cmpi ne, %1, %c0_i32_0 : i32
    scf.if %2 {
      %cst_10 = arith.constant 0.000000e+00 : f32
      %12 = vector.broadcast %cst_10 : f32 to vector<8x128xf32>
      %c0_11 = arith.constant 0 : index
      %c0_12 = arith.constant 0 : index
      %13 = vector.load %arg7[%c0_11, %c0_12] : memref<8x128xf32, #tpu.memory_space<vmem>>, vector<8x128xf32>
      tpu.vector_store %arg7[%c0_11, %c0_12], %12 {strides = array<i32>} : memref<8x128xf32, #tpu.memory_space<vmem>>, vector<8x128xf32>,
    } else {
    }
    %c0 = arith.constant 0 : index
    %c0_1 = arith.constant 0 : index
    %3 = vector.load %arg7[%c0, %c0_1] : memref<8x128xf32, #tpu.memory_space<vmem>>, vector<8x128xf32>
    %c0_2 = arith.constant 0 : index
    %c0_3 = arith.constant 0 : index
    %4 = vector.load %arg3[%c0_2, %c0_3] : memref<8x128xf32, #tpu.memory_space<vmem>>, vector<8x128xf32>
    %c0_4 = arith.constant 0 : index
    %c0_5 = arith.constant 0 : index
    %5 = vector.load %arg4[%c0_4, %c0_5] : memref<128x128xf32, #tpu.memory_space<vmem>>, vector<128x128xf32>
    %cst = arith.constant dense<0.000000e+00> : vector<8x128xf32>
    %6 = tpu.matmul %4, %5, %cst {dimension_numbers = #tpu.dot_dimension_numbers<[1], [0], [0], [1], [0, 0, 1, 1], [], []>} : vector<8x128xf32>, vector<128x128xf32>, vector<8x128xf32> -> vector<8x128xf32>
    %7 = arith.addf %3, %6 : vector<8x128xf32>
    %c0_6 = arith.constant 0 : index
    %c0_7 = arith.constant 0 : index
    %8 = vector.load %arg7[%c0_6, %c0_7] : memref<8x128xf32, #tpu.memory_space<vmem>>, vector<8x128xf32>
    tpu.vector_store %arg7[%c0_6, %c0_7], %7 {strides = array<i32>} : memref<8x128xf32, #tpu.memory_space<vmem>>, vector<8x128xf32>,
    %c0_i32_8 = arith.constant 0 : i32
    %9 = arith.cmpi eq, %arg2, %c0_i32_8 : i32
    %10 = arith.extui %9 : i1 to i32
    %c0_i32_9 = arith.constant 0 : i32
    %11 = arith.cmpi ne, %10, %c0_i32_9 : i32
    scf.if %11 {
      %c0_10 = arith.constant 0 : index
      %c0_11 = arith.constant 0 : index
      %12 = vector.load %arg7[%c0_10, %c0_11] : memref<8x128xf32, #tpu.memory_space<vmem>>, vector<8x128xf32>
      %c0_12 = arith.constant 0 : index
      %c0_13 = arith.constant 0 : index
      %13 = vector.load %arg5[%c0_12, %c0_13] : memref<1x128xf32, #tpu.memory_space<vmem>>, vector<1x128xf32>
      %14 = vector.broadcast %13 : vector<1x128xf32> to vector<8x128xf32>
      %15 = arith.addf %12, %14 : vector<8x128xf32>
      %c0_14 = arith.constant 0 : index
      %c0_15 = arith.constant 0 : index
      %16 = vector.load %arg6[%c0_14, %c0_15] : memref<8x128xi8, #tpu.memory_space<vmem>>, vector<8x128xi8>
      %c0_i8 = arith.constant 0 : i8
      %17 = vector.broadcast %c0_i8 : i8 to vector<8x128xi8>
      %18 = arith.cmpi ne, %16, %17 : vector<8x128xi8>
      %cst_16 = arith.constant 0.000000e+00 : f32
      %19 = vector.broadcast %cst_16 : f32 to vector<8x128xf32>
      %20 = arith.select %18, %15, %19 : vector<8x128xi1>, vector<8x128xf32>
      %c0_17 = arith.constant 0 : index
      %c0_18 = arith.constant 0 : index
      %21 = vector.load %arg7[%c0_17, %c0_18] : memref<8x128xf32, #tpu.memory_space<vmem>>, vector<8x128xf32>
      tpu.vector_store %arg7[%c0_17, %c0_18], %20 {strides = array<i32>} : memref<8x128xf32, #tpu.memory_space<vmem>>, vector<8x128xf32>,
    } else {
    }
    return
  }
  func.func @transform_0(%arg0: i32, %arg1: i32, %arg2: i32) -> (i32, i32) {
    %c0_i32 = arith.constant 0 : i32
    return %arg0, %arg2 : i32, i32
  }
  func.func @transform_1(%arg0: i32, %arg1: i32, %arg2: i32) -> (i32, i32) {
    %c0_i32 = arith.constant 0 : i32
    return %arg2, %arg1 : i32, i32
  }
  func.func @transform_2(%arg0: i32, %arg1: i32, %arg2: i32) -> (i32, i32) {
    %c0_i32 = arith.constant 0 : i32
    %c0_i32_0 = arith.constant 0 : i32
    return %c0_i32, %arg1 : i32, i32
  }
  func.func @transform_3(%arg0: i32, %arg1: i32, %arg2: i32) -> (i32, i32) {
    %c0_i32 = arith.constant 0 : i32
    return %arg0, %arg1 : i32, i32
  }
  func.func @transform_4(%arg0: i32, %arg1: i32, %arg2: i32) -> (i32, i32) {
    %c0_i32 = arith.constant 0 : i32
    return %arg0, %arg1 : i32, i32
  }
}

</mosaic_0001>

<llo_original>
// kernel: _generator_masked_impl.1
$region0: #{_generator_masked_impl.1}
  #allocation0 [shape = 'u32[]', space=smem, size = 0x4, offset = 0x4, fixed_abs, tag = 'smem constant byte address 0x4 - core index']
  #allocation1 [shape = 'u32[72,128]{1,0:T(1,128)}', space=vmem, size = 0x9000, scoped, tag = 'internal scratch']
  %s0 = inlined_call_operand.vmem [shape: f32[8,128], index: 0, kind: input, shape index: {}]
  %s1 = inlined_call_operand.hbm [shape: f32[128,128], index: 1, kind: input, shape index: {}]
  %s2 = inlined_call_operand.vmem [shape: f32[1,128], index: 2, kind: input, shape index: {}]
  %s3 = inlined_call_operand.vmem [shape: s8[8,128], index: 3, kind: input, shape index: {}]
  %s4 = inlined_call_operand.vmem [shape: f32[8,128], index: 4, kind: output, shape index: {}]
  %s5 = sld [smem:[#allocation0]]
  $region38: #{_generator_masked_impl.1} parent=0
    _
  %s7 = ssub.s32 1, %s5
  %s8 = scalar_select 0, %s7, %s5
  $region1: #{_generator_masked_impl.1} parent=0
    #allocation2 [shape = 'u8[65536]{0}', space=vmem, size = 0x10000, scoped, tag = 'input window, operand 1, single buffered']
    #allocation3 [shape = 's32[1]{0}', space=sflag, size = 0x4, scoped, tag = 'scoped memory for _generator_masked_impl.1']
    %9 = vsyncpa [#allocation3], 0
    // Predicated region
    $region2: #{_generator_masked_impl.1} parent=1 // pred_check
      _
    $region3: #{_generator_masked_impl.1} parent=1 // pred_check_branch
      %11 = sbr.rel (0) target = $region5
    $region4: #{_generator_masked_impl.1} parent=1 // pred_region
      _
    $region5: #{_generator_masked_impl.1} parent=1 // pred_fallthru
      _
    // Predicated region
    $region6: #{_generator_masked_impl.1} parent=1 // pred_check
      _
    $region7: #{_generator_masked_impl.1} parent=1 // pred_check_branch
      %13 = sbr.rel (0) target = $region9
    $region8: #{_generator_masked_impl.1} parent=1 // pred_region
      %15 = vsyncadd [#allocation3], 0
      %s16 = sshll.u32 %s1, 4
      %s17 = int_to_ptr.hbm [resolvable:$true] %s16
      %s18 = sshll.u32 [#allocation2], 4
      %s19 = int_to_ptr.vmem [resolvable:$true] %s18
      %24 = dma.hbm_to_vmem [thread:$0]  %s17, 2048, %s19, [#allocation3], 128, 128, 8
    $region9: #{_generator_masked_impl.1} parent=1 // pred_fallthru
      _
    // Predicated region
    $region10: #{_generator_masked_impl.1} parent=1 // pred_check
      _
    $region11: #{_generator_masked_impl.1} parent=1 // pred_check_branch
      %26 = sbr.rel (0) target = $region13
    $region12: #{_generator_masked_impl.1} parent=1 // pred_region
      _
    $region13: #{_generator_masked_impl.1} parent=1 // pred_fallthru
      _
    // Predicated region
    $region14: #{_generator_masked_impl.1} parent=1 // pred_check
      _
    $region15: #{_generator_masked_impl.1} parent=1 // pred_check_branch
      %28 = sbr.rel (0) target = $region17
    $region16: #{_generator_masked_impl.1} parent=1 // pred_region
      _
    $region17: #{_generator_masked_impl.1} parent=1 // pred_fallthru
      _
    // Predicated region
    $region18: #{_generator_masked_impl.1} parent=1 // pred_check
      _
    $region19: #{_generator_masked_impl.1} parent=1 // pred_check_branch
      %30 = sbr.rel (0) target = $region21
    $region20: #{_generator_masked_impl.1} parent=1 // pred_region
      %32 = dma.done [#allocation3], 2048
    $region21: #{_generator_masked_impl.1} parent=1 // pred_fallthru
      _
    %p35 = scmp.eq.s32.totalorder 0, 0
    // Predicated region
    $region22: #{_generator_masked_impl.1} parent=1 // pred_check
      %p36 = pneg %p35
    $region23: #{_generator_masked_impl.1} parent=1 // pred_check_branch
      %38 = sbr.rel (%p36) target = $region25
    $region24: #{_generator_masked_impl.1} parent=1 // pred_region
      %39 = vst [vmem:[%s4] sm:$0xff] 0.0
    $region25: #{_generator_masked_impl.1} parent=1 // pred_fallthru
      _
    %v40 = vld [vmem:[%s4] sm:$0xff]
    %v41 = vld [vmem:[%s0] sm:$0xff]
    %v42 = vld [vmem:[#allocation2] sm:$0xff]
    %v43 = vld [vmem:[#allocation2 + $0x8] sm:$0xff]
    %v44 = vld [vmem:[#allocation2 + $0x10] sm:$0xff]
    %v45 = vld [vmem:[#allocation2 + $0x18] sm:$0xff]
    %v46 = vld [vmem:[#allocation2 + $0x20] sm:$0xff]
    %v47 = vld [vmem:[#allocation2 + $0x28] sm:$0xff]
    %v48 = vld [vmem:[#allocation2 + $0x30] sm:$0xff]
    %v49 = vld [vmem:[#allocation2 + $0x38] sm:$0xff]
    %v50 = vld [vmem:[#allocation2 + $0x40] sm:$0xff]
    %v51 = vld [vmem:[#allocation2 + $0x48] sm:$0xff]
    %v52 = vld [vmem:[#allocation2 + $0x50] sm:$0xff]
    %v53 = vld [vmem:[#allocation2 + $0x58] sm:$0xff]
    %v54 = vld [vmem:[#allocation2 + $0x60] sm:$0xff]
    %v55 = vld [vmem:[#allocation2 + $0x68] sm:$0xff]
    %v56 = vld [vmem:[#allocation2 + $0x70] sm:$0xff]
    %v57 = vld [vmem:[#allocation2 + $0x78] sm:$0xff]
    %58 = vmatpush.msra.mxu0 %v57
    %59 = vmatpush.msra.mxu0 %v56
    %60 = vmatpush.msra.mxu0 %v55
    %61 = vmatpush.msra.mxu0 %v54
    %62 = vmatpush.msra.mxu0 %v53
    %63 = vmatpush.msra.mxu0 %v52
    %64 = vmatpush.msra.mxu0 %v51
    %65 = vmatpush.msra.mxu0 %v50
    %66 = vmatpush.msra.mxu0 %v49
    %67 = vmatpush.msra.mxu0 %v48
    %68 = vmatpush.msra.mxu0 %v47
    %69 = vmatpush.msra.mxu0 %v46
    %70 = vmatpush.msra.mxu0 %v45
    %71 = vmatpush.msra.mxu0 %v44
    %72 = vmatpush.msra.mxu0 %v43
    %73 = vmatpush.msra.mxu0 %v42
    %74 = vmatmul.f32.gmra.mxu0 %v41
    %v75 = vpop.f32.mrf.mxu0
    %v76 = vadd.f32 0.0, %v75
    %77 = vdwg.mxu0
    %v78 = vadd.f32 %v40, %v76
    %79 = vst [vmem:[%s4] sm:$0xff] %v78
    // Predicated region
    $region26: #{_generator_masked_impl.1} parent=1 // pred_check
      %p80 = pneg %p35
    $region27: #{_generator_masked_impl.1} parent=1 // pred_check_branch
      %82 = sbr.rel (%p80) target = $region29
    $region28: #{_generator_masked_impl.1} parent=1 // pred_region
      %v83 = vld [vmem:[%s4] sm:$0xff]
      %v84 = vld [vmem:[%s2] sm:$0x1]
      %v86 = vperm.slane %v84, 0
      %v88 = vadd.f32 %v83, %v86
      %v89 = vld [vmem:[%s3] sm:$0x3]
      %vm90 = vnez %v89
      %v91 = vsel %vm90, 16843009, 0
      %v92 = vunpack.c.0.s8 %v91
      %vm93 = vcmp.ne.s32.totalorder %v92, 0
      %v94 = vsel %vm93, %v88, 0.0
      %95 = vst [vmem:[%s4] sm:$0xff] %v94
    $region29: #{_generator_masked_impl.1} parent=1 // pred_fallthru
      _
    // Predicated region
    $region30: #{_generator_masked_impl.1} parent=1 // pred_check
      _
    $region31: #{_generator_masked_impl.1} parent=1 // pred_check_branch
      %97 = sbr.rel (0) target = $region33
    $region32: #{_generator_masked_impl.1} parent=1 // pred_region
      _
    $region33: #{_generator_masked_impl.1} parent=1 // pred_fallthru
      _
    // Predicated region
    $region34: #{_generator_masked_impl.1} parent=1 // pred_check
      _
    $region35: #{_generator_masked_impl.1} parent=1 // pred_check_branch
      %99 = sbr.rel (0) target = $region37
    $region36: #{_generator_masked_impl.1} parent=1 // pred_region
      _
    $region37: #{_generator_masked_impl.1} parent=1 // pred_fallthru
      _
    %100 = vsyncpa [#allocation3], 1

</llo_original>
